<compile_context>
chip_gen: v6e
topology: v6e:2x2x1
jax: 0.10.0
libtpu: 0.0.40
codegen_flags: <defaults>
</compile_context>

<pallas_src>
import math
from functools import partial

import jax
import jax.numpy as jnp
from jax.experimental import pallas as pl
from jax.experimental.pallas import tpu as pltpu


def _round_up(a, b):
    return ((a + b - 1) // b) * b


def _vmem_capacity_bytes():
    try:
        return int(pltpu.get_tpu_info().vmem_capacity_bytes)
    except Exception:
        return 64 * 1024 * 1024  # conservative fallback (v7x per-core VMEM)


# ----------------------------------------------------------------------------
# Kernel 1: Linear (x @ W + b), tiled over N, with folded-BN statistics
# ----------------------------------------------------------------------------
def linear_stats_kernel(x_ref, w_ref, b_ref, g_ref, beta_ref,
                        h_ref, stats_ref, sum_ref, sq_ref,
                        *, n_total, tile_n, c_in, eps):
    t = pl.program_id(0)
    last = pl.num_programs(0) - 1

    @pl.when(t == 0)
    def _init():
        sum_ref[...] = jnp.zeros_like(sum_ref)
        sq_ref[...] = jnp.zeros_like(sq_ref)

    x = x_ref[...].astype(jnp.float32)                      # (tile_n, c_in)
    if c_in <= 8:
        # Tiny contraction: c_in broadcast FMAs on the VPU instead of a
        # K=c_in MXU matmul (avoids MXU push/pop latency for K=4).
        h = x[:, 0:1] * w_ref[0:1, :]
        for j in range(1, c_in):
            h = h + x[:, j:j + 1] * w_ref[j:j + 1, :]
        h = h + b_ref[...]
    else:
        h = jnp.dot(x, w_ref[...], preferred_element_type=jnp.float32) + b_ref[...]
    h_ref[...] = h.astype(h_ref.dtype)                      # (tile_n, c_out)

    # Unmasked accumulation on all full tiles (mask only needed on the last).
    @pl.when(t != last)
    def _acc():
        sum_ref[...] += jnp.sum(h, axis=0, keepdims=True)
        sq_ref[...] += jnp.sum(h * h, axis=0, keepdims=True)

    @pl.when(t == last)
    def _acc_mask_finalize():
        row = t * tile_n + jax.lax.broadcasted_iota(jnp.int32, h.shape, 0)
        hm = jnp.where(row < n_total, h, 0.0)
        s = sum_ref[...] + jnp.sum(hm, axis=0, keepdims=True)
        q = sq_ref[...] + jnp.sum(hm * hm, axis=0, keepdims=True)
        inv_n = 1.0 / n_total
        mean = s * inv_n
        # Clamp: single-pass E[h^2]-E[h]^2 can go slightly negative in f32.
        var = jnp.maximum(q * inv_n - mean * mean, 0.0)
        scale = g_ref[...] * jax.lax.rsqrt(var + eps)
        shift = beta_ref[...] - mean * scale
        stats_ref[0:1, :] = scale
        stats_ref[1:2, :] = shift


def mlp_linear_stats(x, w_t, b, gamma, beta, *, eps=1e-5, tile_n=1024):
    n, c_in = x.shape
    c_out = w_t.shape[1]
    tile_n = max(8, min((tile_n // 8) * 8, _round_up(n, 8)))
    grid_n = pl.cdiv(n, tile_n)
    kern = partial(linear_stats_kernel, n_total=n, tile_n=tile_n,
                   c_in=c_in, eps=eps)
    # TODO(synk): on v7x (2 TensorCores) add a leading "parallel" grid axis over
    #             row-chunks with per-chunk partial (sum, sq) outputs folded in JAX.
    return pl.pallas_call(
        kern,
        out_shape=(jax.ShapeDtypeStruct((n, c_out), jnp.float32),   # h = xW+b
                   jax.ShapeDtypeStruct((2, c_out), jnp.float32)),  # scale/shift
        grid_spec=pltpu.PrefetchScalarGridSpec(
            num_scalar_prefetch=0,
            grid=(grid_n,),
            in_specs=[pl.BlockSpec((tile_n, c_in), lambda t: (t, 0)),
                      pl.BlockSpec((c_in, c_out), lambda t: (0, 0)),
                      pl.BlockSpec((1, c_out), lambda t: (0, 0)),
                      pl.BlockSpec((1, c_out), lambda t: (0, 0)),
                      pl.BlockSpec((1, c_out), lambda t: (0, 0))],
            out_specs=(pl.BlockSpec((tile_n, c_out), lambda t: (t, 0)),
                       pl.BlockSpec((2, c_out), lambda t: (0, 0))),
            scratch_shapes=[pltpu.VMEM((1, c_out), jnp.float32),
                            pltpu.VMEM((1, c_out), jnp.float32)]),
        compiler_params=pltpu.CompilerParams(
            dimension_semantics=("arbitrary",)),   # resident stats accumulator
    )(x, w_t, b, gamma, beta)


# ----------------------------------------------------------------------------
# Kernel 2: per-cluster kNN gather + (8,C)-block tree max/min + BN affine + ReLU
# ----------------------------------------------------------------------------
def _tree_reduce(vals, op):
    vals = list(vals)
    while len(vals) > 1:
        nxt = [op(vals[i], vals[i + 1]) for i in range(0, len(vals) - 1, 2)]
        if len(vals) % 2:
            nxt.append(vals[-1])
        vals = nxt
    return vals[0]


def knn_norm_max_kernel(idx_ref, feats_ref, stats_ref, o_ref,
                        gbuf_ref, mx_ref, mn_ref, *, tile_m, k):
    # idx_ref:   SMEM (M_pad*k,) int32 neighbor indices (row-major per cluster)
    # feats_ref: VMEM (N, C) un-normalized h = xW+b (resident, constant block)
    # stats_ref: VMEM (2, C) folded BN affine: row0=scale, row1=shift
    # o_ref:     VMEM (tile_m, C) per-cluster pooled output block
    # gbuf_ref:  VMEM (8*k, C)   gather staging for one 8-cluster group
    # mx_ref/mn_ref: VMEM (tile_m, C) per-tile reduced accumulators
    t = pl.program_id(0)
    base = t * (tile_m * k)
    n_groups = tile_m // 8

    def group_body(g, carry):
        goff = pl.multiple_of(g * 8, 8)
        gbase = base + g * (8 * k)
        # Gather 8 clusters x k neighbors; row of neighbor j of local cluster i
        # lands at gbuf row j*8 + i so each j forms a dense (8, C) block.
        for i in range(8):                          # static unroll (small)
            for j in range(k):                      # static unroll (k)
                r = idx_ref[gbase + i * k + j]
                gbuf_ref[pl.ds(j * 8 + i, 1), :] = feats_ref[pl.ds(r, 1), :]
        blocks = [gbuf_ref[pl.ds(j * 8, 8), :] for j in range(k)]
        mx_ref[pl.ds(goff, 8), :] = _tree_reduce(blocks, jnp.maximum)
        mn_ref[pl.ds(goff, 8), :] = _tree_reduce(blocks, jnp.minimum)
        return carry

    jax.lax.fori_loop(0, n_groups, group_body, 0)

    scale = stats_ref[0:1, :]
    shift = stats_ref[1:2, :]
    # max_j relu(scale*h_j + shift) == relu(scale*(max if scale>=0 else min) + shift)
    y = jnp.where(scale >= 0.0, scale * mx_ref[...], scale * mn_ref[...]) + shift
    o_ref[...] = jnp.maximum(y, 0.0).astype(o_ref.dtype)    # one dense store/block


def knn_norm_max(feats, stats, nbr_idx, *, tile_m=64):
    n, c = feats.shape
    m, k = nbr_idx.shape
    tile_m = max(8, min((tile_m // 8) * 8, _round_up(m, 8)))
    m_pad = pl.cdiv(m, tile_m) * tile_m
    if m_pad != m:
        nbr_idx = jnp.pad(nbr_idx, ((0, m_pad - m), (0, 0)))  # pad w/ index 0
    idx_flat = nbr_idx.reshape(-1).astype(jnp.int32)
    # TODO(synk): for very large M*k, tile the index array into SMEM per grid
    #             step instead of scalar-prefetching the whole (M_pad*k,) array
    #             (1-D SMEM pads to next_pow2(4N) bytes).

    # VMEM accounting with (8,128) tile padding: a (N, C<=128) f32 array
    # occupies ceil(N/8)*8 * 128 * 4 bytes when resident.
    lanes = max(128, _round_up(c, 128))
    feats_vmem = _round_up(n, 8) * lanes * 4
    out_vmem = 2 * _round_up(tile_m, 8) * lanes * 4          # double-buffered out
    scratch_vmem = (_round_up(8 * k, 8) + 2 * _round_up(tile_m, 8) + 16) * lanes * 4
    cap = _vmem_capacity_bytes()

    def build(feats_buffers):
        idx_map = lambda t, idx: (0, 0)
        if feats_buffers == 1:
            # Constant index_map => single-buffer the resident feats block.
            feats_spec = pl.BlockSpec((n, c), idx_map, pipeline_mode=pl.Buffered(1))
        else:
            feats_spec = pl.BlockSpec((n, c), idx_map)
        need = feats_buffers * feats_vmem + out_vmem + scratch_vmem + (4 << 20)
        vmem_limit = int(min(cap - (16 << 20), max(32 << 20, need)))
        # TODO(synk): if `need` exceeds the per-core cap (huge N), switch feats to
        #             memory_space=pl.ANY and DMA-gather only the M*k needed rows.
        kern = partial(knn_norm_max_kernel, tile_m=tile_m, k=k)
        return pl.pallas_call(
            kern,
            out_shape=jax.ShapeDtypeStruct((m_pad, c), jnp.float32),
            grid_spec=pltpu.PrefetchScalarGridSpec(
                num_scalar_prefetch=1,
                grid=(m_pad // tile_m,),
                in_specs=[feats_spec,
                          pl.BlockSpec((2, c), lambda t, idx: (0, 0))],
                out_specs=pl.BlockSpec((tile_m, c), lambda t, idx: (t, 0)),
                scratch_shapes=[pltpu.VMEM((8 * k, c), jnp.float32),
                                pltpu.VMEM((tile_m, c), jnp.float32),
                                pltpu.VMEM((tile_m, c), jnp.float32)]),
            compiler_params=pltpu.CompilerParams(
                dimension_semantics=("parallel",),   # cluster tiles across TCs
                vmem_limit_bytes=vmem_limit),
        )

    try:
        out = build(1)(idx_flat, feats, stats)
    except Exception:
        # pipeline_mode=pl.Buffered(1) unsupported on this jax/libtpu combo:
        # fall back to the default (double-buffered, correctly accounted) path.
        out = build(2)(idx_flat, feats, stats)
    return out[:m]


# ----------------------------------------------------------------------------
# Plain-JAX glue: FPS and kNN graph construction
# ----------------------------------------------------------------------------
def fps_segment(pos_seg, m, start_idx):
    """Farthest point sampling on one batch segment. Returns local indices."""
    # TODO(synk): sequential argmax loop has no clean Pallas equivalent.
    n = pos_seg.shape[0]

    def body(i, carry):
        sel, mind = carry
        last = sel[i - 1]
        d = jnp.sum((pos_seg - pos_seg[last]) ** 2, axis=-1)
        mind = jnp.minimum(mind, d)
        nxt = jnp.argmax(mind).astype(jnp.int32)
        sel = sel.at[i].set(nxt)
        return sel, mind

    sel0 = jnp.zeros((m,), jnp.int32).at[0].set(start_idx.astype(jnp.int32))
    mind0 = jnp.full((n,), jnp.inf, jnp.float32)
    sel, _ = jax.lax.fori_loop(1, m, body, (sel0, mind0))
    return sel


def transition_down(x, pos, batch, params, *, ratio, k, num_batches,
                    rng_key, random_start=True):
    n = pos.shape[0]
    n_per = n // num_batches
    m_per = int(math.ceil(ratio * n_per))

    # ---- FPS per batch segment (sequential -> plain JAX) ----
    pos_b = pos.reshape(num_batches, n_per, 3)
    if random_start:
        starts = jax.random.randint(rng_key, (num_batches,), 0, n_per,
                                    dtype=jnp.int32)
    else:
        starts = jnp.zeros((num_batches,), jnp.int32)
    local_idx = jax.vmap(lambda p, s: fps_segment(p, m_per, s))(pos_b, starts)
    offsets = (jnp.arange(num_batches, dtype=jnp.int32) * n_per)[:, None]
    id_clusters = (local_idx + offsets).reshape(-1)              # (M,)

    sub_batch = batch[id_clusters]
    sub_pos = pos[id_clusters]

    # ---- kNN graph (top-k selection -> plain JAX) ----
    # TODO(synk): for large N the O(M*N) distance matrix + top_k dominates;
    #             a streaming Pallas distance + running top-k kernel is the
    #             next structural win.
    d2 = jnp.sum((sub_pos[:, None, :] - pos[None, :, :]) ** 2, axis=-1)  # (M,N)
    same = sub_batch[:, None] == batch[None, :]
    d2 = jnp.where(same, d2, jnp.inf)
    _, nbr_idx = jax.lax.top_k(-d2, k)                            # (M, k)

    # ---- Pallas hot paths ----
    h, stats = mlp_linear_stats(x, params["w_t"], params["b"],
                                params["gamma"], params["beta"])  # (N,Cout),(2,Cout)
    out = knn_norm_max(h, stats, nbr_idx)                         # (M, Cout)

    return out, sub_pos, sub_batch


# ----------------------------------------------------------------------------
# Pure-JAX reference for sanity checking the Pallas path
# ----------------------------------------------------------------------------
def _reference(x, params, nbr_idx):
    h = x @ params["w_t"] + params["b"]
    mean = jnp.mean(h, axis=0, keepdims=True)
    var = jnp.mean((h - mean) ** 2, axis=0, keepdims=True)
    y = (h - mean) / jnp.sqrt(var + 1e-5) * params["gamma"] + params["beta"]
    y = jnp.maximum(y, 0.0)
    return jnp.max(y[nbr_idx], axis=1)


if __name__ == "__main__":
    # Small, module-consistent shapes
    B = 2                 # batch graphs
    N_PER = 32            # points per graph
    N = B * N_PER
    C_IN = 4
    C_OUT = 32
    RATIO = 0.25
    K = 16

    key = jax.random.PRNGKey(0)
    k_x, k_pos, k_w, k_b, k_fps = jax.random.split(key, 5)

    x = jax.random.normal(k_x, (N, C_IN), jnp.float32)
    pos = jax.random.uniform(k_pos, (N, 3), jnp.float32)
    batch = jnp.repeat(jnp.arange(B, dtype=jnp.int32), N_PER)

    # Deterministic parameter init (Linear weight/bias, BN gamma/beta defaults)
    w = jax.random.normal(k_w, (C_OUT, C_IN), jnp.float32) * 0.1   # torch: (out,in)
    b = jax.random.normal(k_b, (C_OUT,), jnp.float32) * 0.1
    params = {
        "w_t": w.T,                                    # (C_IN, C_OUT)
        "b": b.reshape(1, C_OUT),
        "gamma": jnp.ones((1, C_OUT), jnp.float32),
        "beta": jnp.zeros((1, C_OUT), jnp.float32),
    }
    # NOTE: BatchNorm1d is modeled in training mode (batch stats, biased var);
    # running_mean/var are not tracked (matches the PyTorch forward math only).

    out, sub_pos, sub_batch = transition_down(
        x, pos, batch, params, ratio=RATIO, k=K, num_batches=B,
        rng_key=k_fps, random_start=True)
    jax.block_until_ready(out)
    jax.block_until_ready(sub_pos)
    jax.block_until_ready(sub_batch)

    # Sanity: recompute the kNN indices used above and compare kernels vs jnp ref
    d2 = jnp.sum((sub_pos[:, None, :] - pos[None, :, :]) ** 2, axis=-1)
    d2 = jnp.where(sub_batch[:, None] == batch[None, :], d2, jnp.inf)
    _, nbr_idx = jax.lax.top_k(-d2, K)
    ref = _reference(x, params, nbr_idx)
    assert out.shape == (int(B * math.ceil(RATIO * N_PER)), C_OUT)
    assert jnp.allclose(out, ref, atol=1e-3), "Pallas output mismatch"

    print("KERNEL_OK")
</pallas_src>

<mosaic_0001>
module attributes {stable_mosaic.version = 11 : i64} {
  func.func @linear_stats_kernel(%arg0: i32, %arg1: memref<64x4xf32, #tpu.memory_space<vmem>>, %arg2: memref<4x32xf32, #tpu.memory_space<vmem>>, %arg3: memref<1x32xf32, #tpu.memory_space<vmem>>, %arg4: memref<1x32xf32, #tpu.memory_space<vmem>>, %arg5: memref<1x32xf32, #tpu.memory_space<vmem>>, %arg6: memref<64x32xf32, #tpu.memory_space<vmem>>, %arg7: memref<2x32xf32, #tpu.memory_space<vmem>>, %arg8: memref<1x32xf32, #tpu.memory_space<vmem>>, %arg9: memref<1x32xf32, #tpu.memory_space<vmem>>) attributes {dimension_semantics = [#tpu.dimension_semantics<arbitrary>], iteration_bounds = array<i64: 1>, scalar_prefetch = 0 : i64, scratch_operands = 2 : i64, tpu.core_type = #tpu.core_type<tc>, window_params = [{transform_indices = @transform_0, window_bounds = array<i64: 64, 4>}, {pipeline_mode = #tpu.pipeline_mode<synchronous>, transform_indices = @transform_1, window_bounds = array<i64: 4, 32>}, {pipeline_mode = #tpu.pipeline_mode<synchronous>, transform_indices = @transform_2, window_bounds = array<i64: 1, 32>}, {pipeline_mode = #tpu.pipeline_mode<synchronous>, transform_indices = @transform_3, window_bounds = array<i64: 1, 32>}, {pipeline_mode = #tpu.pipeline_mode<synchronous>, transform_indices = @transform_4, window_bounds = array<i64: 1, 32>}, {transform_indices = @transform_5, window_bounds = array<i64: 64, 32>}, {pipeline_mode = #tpu.pipeline_mode<synchronous>, transform_indices = @transform_6, window_bounds = array<i64: 2, 32>}]} {
    %c0_i32 = arith.constant 0 : i32
    %0 = arith.cmpi eq, %arg0, %c0_i32 : i32
    %1 = arith.extui %0 : i1 to i32
    %c0_i32_0 = arith.constant 0 : i32
    %2 = arith.cmpi ne, %1, %c0_i32_0 : i32
    scf.if %2 {
      %cst = arith.constant 0.000000e+00 : f32
      %37 = vector.broadcast %cst : f32 to vector<1x32xf32>
      %c0_15 = arith.constant 0 : index
      %c0_16 = arith.constant 0 : index
      %38 = vector.load %arg8[%c0_15, %c0_16] : memref<1x32xf32, #tpu.memory_space<vmem>>, vector<1x32xf32>
      tpu.vector_store %arg8[%c0_15, %c0_16], %37 {strides = array<i32>} : memref<1x32xf32, #tpu.memory_space<vmem>>, vector<1x32xf32>,
      %cst_17 = arith.constant 0.000000e+00 : f32
      %39 = vector.broadcast %cst_17 : f32 to vector<1x32xf32>
      %c0_18 = arith.constant 0 : index
      %c0_19 = arith.constant 0 : index
      %40 = vector.load %arg9[%c0_18, %c0_19] : memref<1x32xf32, #tpu.memory_space<vmem>>, vector<1x32xf32>
      tpu.vector_store %arg9[%c0_18, %c0_19], %39 {strides = array<i32>} : memref<1x32xf32, #tpu.memory_space<vmem>>, vector<1x32xf32>,
    } else {
    }
    %c0 = arith.constant 0 : index
    %c0_1 = arith.constant 0 : index
    %3 = vector.load %arg1[%c0, %c0_1] : memref<64x4xf32, #tpu.memory_space<vmem>>, vector<64x4xf32>
    %4 = vector.extract_strided_slice %3 {offsets = [0, 0], sizes = [64, 1], strides = [1, 1]} : vector<64x4xf32> to vector<64x1xf32>
    %c0_2 = arith.constant 0 : index
    %c0_3 = arith.constant 0 : index
    %5 = vector.load %arg2[%c0_2, %c0_3] : memref<4x32xf32, #tpu.memory_space<vmem>>, vector<1x32xf32>
    %6 = vector.broadcast %4 : vector<64x1xf32> to vector<64x32xf32>
    %7 = vector.broadcast %5 : vector<1x32xf32> to vector<64x32xf32>
    %8 = arith.mulf %6, %7 : vector<64x32xf32>
    %9 = vector.extract_strided_slice %3 {offsets = [0, 1], sizes = [64, 1], strides = [1, 1]} : vector<64x4xf32> to vector<64x1xf32>
    %c1 = arith.constant 1 : index
    %c0_4 = arith.constant 0 : index
    %10 = vector.load %arg2[%c1, %c0_4] : memref<4x32xf32, #tpu.memory_space<vmem>>, vector<1x32xf32>
    %11 = vector.broadcast %9 : vector<64x1xf32> to vector<64x32xf32>
    %12 = vector.broadcast %10 : vector<1x32xf32> to vector<64x32xf32>
    %13 = arith.mulf %11, %12 : vector<64x32xf32>
    %14 = arith.addf %8, %13 : vector<64x32xf32>
    %15 = vector.extract_strided_slice %3 {offsets = [0, 2], sizes = [64, 1], strides = [1, 1]} : vector<64x4xf32> to vector<64x1xf32>
    %c2 = arith.constant 2 : index
    %c0_5 = arith.constant 0 : index
    %16 = vector.load %arg2[%c2, %c0_5] : memref<4x32xf32, #tpu.memory_space<vmem>>, vector<1x32xf32>
    %17 = vector.broadcast %15 : vector<64x1xf32> to vector<64x32xf32>
    %18 = vector.broadcast %16 : vector<1x32xf32> to vector<64x32xf32>
    %19 = arith.mulf %17, %18 : vector<64x32xf32>
    %20 = arith.addf %14, %19 : vector<64x32xf32>
    %21 = vector.extract_strided_slice %3 {offsets = [0, 3], sizes = [64, 1], strides = [1, 1]} : vector<64x4xf32> to vector<64x1xf32>
    %c3 = arith.constant 3 : index
    %c0_6 = arith.constant 0 : index
    %22 = vector.load %arg2[%c3, %c0_6] : memref<4x32xf32, #tpu.memory_space<vmem>>, vector<1x32xf32>
    %23 = vector.broadcast %21 : vector<64x1xf32> to vector<64x32xf32>
    %24 = vector.broadcast %22 : vector<1x32xf32> to vector<64x32xf32>
    %25 = arith.mulf %23, %24 : vector<64x32xf32>
    %26 = arith.addf %20, %25 : vector<64x32xf32>
    %c0_7 = arith.constant 0 : index
    %c0_8 = arith.constant 0 : index
    %27 = vector.load %arg3[%c0_7, %c0_8] : memref<1x32xf32, #tpu.memory_space<vmem>>, vector<1x32xf32>
    %28 = vector.broadcast %27 : vector<1x32xf32> to vector<64x32xf32>
    %29 = arith.addf %26, %28 : vector<64x32xf32>
    %c0_9 = arith.constant 0 : index
    %c0_10 = arith.constant 0 : index
    %30 = vector.load %arg6[%c0_9, %c0_10] : memref<64x32xf32, #tpu.memory_space<vmem>>, vector<64x32xf32>
    tpu.vector_store %arg6[%c0_9, %c0_10], %29 {strides = array<i32>} : memref<64x32xf32, #tpu.memory_space<vmem>>, vector<64x32xf32>,
    %c0_i32_11 = arith.constant 0 : i32
    %31 = arith.cmpi ne, %arg0, %c0_i32_11 : i32
    %32 = arith.extui %31 : i1 to i32
    %c0_i32_12 = arith.constant 0 : i32
    %33 = arith.cmpi ne, %32, %c0_i32_12 : i32
    scf.if %33 {
      %c0_15 = arith.constant 0 : index
      %c0_16 = arith.constant 0 : index
      %37 = vector.load %arg8[%c0_15, %c0_16] : memref<1x32xf32, #tpu.memory_space<vmem>>, vector<1x32xf32>
      %cst = arith.constant dense<0.000000e+00> : vector<32xf32>
      %38 = vector.multi_reduction <add>, %29, %cst [0] : vector<64x32xf32> to vector<32xf32>
      %39 = vector.shape_cast %38 : vector<32xf32> to vector<1x32xf32>
      %40 = arith.addf %37, %39 : vector<1x32xf32>
      %c0_17 = arith.constant 0 : index
      %c0_18 = arith.constant 0 : index
      %41 = vector.load %arg8[%c0_17, %c0_18] : memref<1x32xf32, #tpu.memory_space<vmem>>, vector<1x32xf32>
      tpu.vector_store %arg8[%c0_17, %c0_18], %40 {strides = array<i32>} : memref<1x32xf32, #tpu.memory_space<vmem>>, vector<1x32xf32>,
      %c0_19 = arith.constant 0 : index
      %c0_20 = arith.constant 0 : index
      %42 = vector.load %arg9[%c0_19, %c0_20] : memref<1x32xf32, #tpu.memory_space<vmem>>, vector<1x32xf32>
      %43 = arith.mulf %29, %29 : vector<64x32xf32>
      %cst_21 = arith.constant dense<0.000000e+00> : vector<32xf32>
      %44 = vector.multi_reduction <add>, %43, %cst_21 [0] : vector<64x32xf32> to vector<32xf32>
      %45 = vector.shape_cast %44 : vector<32xf32> to vector<1x32xf32>
      %46 = arith.addf %42, %45 : vector<1x32xf32>
      %c0_22 = arith.constant 0 : index
      %c0_23 = arith.constant 0 : index
      %47 = vector.load %arg9[%c0_22, %c0_23] : memref<1x32xf32, #tpu.memory_space<vmem>>, vector<1x32xf32>
      tpu.vector_store %arg9[%c0_22, %c0_23], %46 {strides = array<i32>} : memref<1x32xf32, #tpu.memory_space<vmem>>, vector<1x32xf32>,
    } else {
    }
    %c0_i32_13 = arith.constant 0 : i32
    %34 = arith.cmpi eq, %arg0, %c0_i32_13 : i32
    %35 = arith.extui %34 : i1 to i32
    %c0_i32_14 = arith.constant 0 : i32
    %36 = arith.cmpi ne, %35, %c0_i32_14 : i32
    scf.if %36 {
      %c64_i32 = arith.constant 64 : i32
      %37 = arith.muli %arg0, %c64_i32 : i32
      %38 = tpu.iota {dimensions = array<i32: 0>} : vector<64x32xi32>
      %39 = vector.broadcast %37 : i32 to vector<64x32xi32>
      %40 = arith.addi %39, %38 : vector<64x32xi32>
      %c64_i32_15 = arith.constant 64 : i32
      %41 = vector.broadcast %c64_i32_15 : i32 to vector<64x32xi32>
      %42 = arith.cmpi slt, %40, %41 : vector<64x32xi32>
      %cst = arith.constant 0.000000e+00 : f32
      %43 = vector.broadcast %cst : f32 to vector<64x32xf32>
      %44 = arith.select %42, %29, %43 : vector<64x32xi1>, vector<64x32xf32>
      %c0_16 = arith.constant 0 : index
      %c0_17 = arith.constant 0 : index
      %45 = vector.load %arg8[%c0_16, %c0_17] : memref<1x32xf32, #tpu.memory_space<vmem>>, vector<1x32xf32>
      %cst_18 = arith.constant dense<0.000000e+00> : vector<32xf32>
      %46 = vector.multi_reduction <add>, %44, %cst_18 [0] : vector<64x32xf32> to vector<32xf32>
      %47 = vector.shape_cast %46 : vector<32xf32> to vector<1x32xf32>
      %48 = arith.addf %45, %47 : vector<1x32xf32>
      %c0_19 = arith.constant 0 : index
      %c0_20 = arith.constant 0 : index
      %49 = vector.load %arg9[%c0_19, %c0_20] : memref<1x32xf32, #tpu.memory_space<vmem>>, vector<1x32xf32>
      %50 = arith.mulf %44, %44 : vector<64x32xf32>
      %cst_21 = arith.constant dense<0.000000e+00> : vector<32xf32>
      %51 = vector.multi_reduction <add>, %50, %cst_21 [0] : vector<64x32xf32> to vector<32xf32>
      %52 = vector.shape_cast %51 : vector<32xf32> to vector<1x32xf32>
      %53 = arith.addf %49, %52 : vector<1x32xf32>
      %cst_22 = arith.constant 1.562500e-02 : f32
      %54 = vector.broadcast %cst_22 : f32 to vector<1x32xf32>
      %55 = arith.mulf %48, %54 : vector<1x32xf32>
      %cst_23 = arith.constant 1.562500e-02 : f32
      %56 = vector.broadcast %cst_23 : f32 to vector<1x32xf32>
      %57 = arith.mulf %53, %56 : vector<1x32xf32>
      %58 = arith.mulf %55, %55 : vector<1x32xf32>
      %59 = arith.subf %57, %58 : vector<1x32xf32>
      %cst_24 = arith.constant 0.000000e+00 : f32
      %60 = vector.broadcast %cst_24 : f32 to vector<1x32xf32>
      %61 = arith.maximumf %59, %60 : vector<1x32xf32>
      %c0_25 = arith.constant 0 : index
      %c0_26 = arith.constant 0 : index
      %62 = vector.load %arg4[%c0_25, %c0_26] : memref<1x32xf32, #tpu.memory_space<vmem>>, vector<1x32xf32>
      %cst_27 = arith.constant 9.99999974E-6 : f32
      %63 = vector.broadcast %cst_27 : f32 to vector<1x32xf32>
      %64 = arith.addf %61, %63 : vector<1x32xf32>
      %65 = math.rsqrt %64 : vector<1x32xf32>
      %66 = arith.mulf %62, %65 : vector<1x32xf32>
      %c0_28 = arith.constant 0 : index
      %c0_29 = arith.constant 0 : index
      %67 = vector.load %arg5[%c0_28, %c0_29] : memref<1x32xf32, #tpu.memory_space<vmem>>, vector<1x32xf32>
      %68 = arith.mulf %55, %66 : vector<1x32xf32>
      %69 = arith.subf %67, %68 : vector<1x32xf32>
      %c0_30 = arith.constant 0 : index
      %c0_31 = arith.constant 0 : index
      %70 = vector.load %arg7[%c0_30, %c0_31] : memref<2x32xf32, #tpu.memory_space<vmem>>, vector<1x32xf32>
      tpu.vector_store %arg7[%c0_30, %c0_31], %66 {strides = array<i32>} : memref<2x32xf32, #tpu.memory_space<vmem>>, vector<1x32xf32>,
      %c1_32 = arith.constant 1 : index
      %c0_33 = arith.constant 0 : index
      %71 = vector.load %arg7[%c1_32, %c0_33] : memref<2x32xf32, #tpu.memory_space<vmem>>, vector<1x32xf32>
      tpu.vector_store %arg7[%c1_32, %c0_33], %69 {strides = array<i32>} : memref<2x32xf32, #tpu.memory_space<vmem>>, vector<1x32xf32>,
    } else {
    }
    return
  }
  func.func @transform_0(%arg0: i32) -> (i32, i32) {
    %c0_i32 = arith.constant 0 : i32
    %c0_i32_0 = arith.constant 0 : i32
    return %arg0, %c0_i32 : i32, i32
  }
  func.func @transform_1(%arg0: i32) -> (i32, i32) {
    %c0_i32 = arith.constant 0 : i32
    %c0_i32_0 = arith.constant 0 : i32
    %c0_i32_1 = arith.constant 0 : i32
    return %c0_i32, %c0_i32_0 : i32, i32
  }
  func.func @transform_2(%arg0: i32) -> (i32, i32) {
    %c0_i32 = arith.constant 0 : i32
    %c0_i32_0 = arith.constant 0 : i32
    %c0_i32_1 = arith.constant 0 : i32
    return %c0_i32, %c0_i32_0 : i32, i32
  }
  func.func @transform_3(%arg0: i32) -> (i32, i32) {
    %c0_i32 = arith.constant 0 : i32
    %c0_i32_0 = arith.constant 0 : i32
    %c0_i32_1 = arith.constant 0 : i32
    return %c0_i32, %c0_i32_0 : i32, i32
  }
  func.func @transform_4(%arg0: i32) -> (i32, i32) {
    %c0_i32 = arith.constant 0 : i32
    %c0_i32_0 = arith.constant 0 : i32
    %c0_i32_1 = arith.constant 0 : i32
    return %c0_i32, %c0_i32_0 : i32, i32
  }
  func.func @transform_5(%arg0: i32) -> (i32, i32) {
    %c0_i32 = arith.constant 0 : i32
    %c0_i32_0 = arith.constant 0 : i32
    return %arg0, %c0_i32 : i32, i32
  }
  func.func @transform_6(%arg0: i32) -> (i32, i32) {
    %c0_i32 = arith.constant 0 : i32
    %c0_i32_0 = arith.constant 0 : i32
    %c0_i32_1 = arith.constant 0 : i32
    return %c0_i32, %c0_i32_0 : i32, i32
  }
}

</mosaic_0001>

<llo_original>
// kernel: tpu_custom_call.1
$region0: #{tpu_custom_call.1}
  #allocation0 [shape = 'u32[]', space=smem, size = 0x4, offset = 0x4, fixed_abs, tag = 'smem constant byte address 0x4 - core index']
  #allocation1 [shape = 'u32[144,128]{1,0:T(1,128)}', space=vmem, size = 0x12000, scoped, tag = 'internal scratch']
  #allocation2 [shape = 'f32[1,32]{1,0:T(1,128)}', space=vmem, size = 0x200, scoped, tag = 'scratch operand']
  #allocation3 [shape = 'f32[1,32]{1,0:T(1,128)}', space=vmem, size = 0x200, scoped, tag = 'scratch operand']
  %s0 = inlined_call_operand.vmem [shape: f32[64,4], index: 0, kind: input, shape index: {}]
  %s1 = inlined_call_operand.vmem [shape: f32[4,32], index: 1, kind: input, shape index: {}]
  %s2 = inlined_call_operand.vmem [shape: f32[1,32], index: 2, kind: input, shape index: {}]
  %s3 = inlined_call_operand.vmem [shape: f32[1,32], index: 3, kind: input, shape index: {}]
  %s4 = inlined_call_operand.vmem [shape: f32[1,32], index: 4, kind: input, shape index: {}]
  %s5 = inlined_call_operand.vmem [shape: f32[64,32], index: 5, kind: output, shape index: {0}]
  %s6 = inlined_call_operand.hbm [shape: f32[2,32], index: 6, kind: output, shape index: {1}]
  %7 = xla_tuple %s5, %s6
  %s8 = sld [smem:[#allocation0]]
  $region50: #{tpu_custom_call.1} parent=0
    _
  %s10 = ssub.s32 1, %s8
  %s11 = scalar_select 0, %s10, %s8
  $region1: #{tpu_custom_call.1} parent=0
    #allocation4 [shape = 'u8[1024]{0}', space=vmem, size = 0x400, scoped, tag = 'output window, operand 1, single buffered']
    #allocation5 [shape = 's32[1]{0}', space=sflag, size = 0x4, scoped, tag = 'scoped memory for tpu_custom_call.1']
    %12 = vsyncpa [#allocation5], 0
    // Predicated region
    $region2: #{tpu_custom_call.1} parent=1 // pred_check
      _
    $region3: #{tpu_custom_call.1} parent=1 // pred_check_branch
      %14 = sbr.rel (0) target = $region5
    $region4: #{tpu_custom_call.1} parent=1 // pred_region
      _
    $region5: #{tpu_custom_call.1} parent=1 // pred_fallthru
      _
    // Predicated region
    $region6: #{tpu_custom_call.1} parent=1 // pred_check
      _
    $region7: #{tpu_custom_call.1} parent=1 // pred_check_branch
      %16 = sbr.rel (0) target = $region9
    $region8: #{tpu_custom_call.1} parent=1 // pred_region
      _
    $region9: #{tpu_custom_call.1} parent=1 // pred_fallthru
      _
    // Predicated region
    $region10: #{tpu_custom_call.1} parent=1 // pred_check
      _
    $region11: #{tpu_custom_call.1} parent=1 // pred_check_branch
      %18 = sbr.rel (0) target = $region13
    $region12: #{tpu_custom_call.1} parent=1 // pred_region
      _
    $region13: #{tpu_custom_call.1} parent=1 // pred_fallthru
      _
    // Predicated region
    $region14: #{tpu_custom_call.1} parent=1 // pred_check
      _
    $region15: #{tpu_custom_call.1} parent=1 // pred_check_branch
      %20 = sbr.rel (0) target = $region17
    $region16: #{tpu_custom_call.1} parent=1 // pred_region
      _
    $region17: #{tpu_custom_call.1} parent=1 // pred_fallthru
      _
    // Predicated region
    $region18: #{tpu_custom_call.1} parent=1 // pred_check
      _
    $region19: #{tpu_custom_call.1} parent=1 // pred_check_branch
      %22 = sbr.rel (0) target = $region21
    $region20: #{tpu_custom_call.1} parent=1 // pred_region
      _
    $region21: #{tpu_custom_call.1} parent=1 // pred_fallthru
      _
    %p23 = scmp.eq.s32.totalorder 0, 0
    // Predicated region
    $region22: #{tpu_custom_call.1} parent=1 // pred_check
      %p24 = pneg %p23
    $region23: #{tpu_custom_call.1} parent=1 // pred_check_branch
      %26 = sbr.rel (%p24) target = $region25
    $region24: #{tpu_custom_call.1} parent=1 // pred_region
      %vm27 = vcmask 253952
      %28 = vst.msk [vmem:[#allocation2] sm:$0x1] %vm27, 0.0
      %29 = vst.msk [vmem:[#allocation3] sm:$0x1] %vm27, 0.0
    $region25: #{tpu_custom_call.1} parent=1 // pred_fallthru
      _
    %v30 = vld [vmem:[%s0] sm:$0xff]
    %v31 = vld [vmem:[%s0 + $0x8] sm:$0xff]
    %v32 = vld [vmem:[%s0 + $0x10] sm:$0xff]
    %v33 = vld [vmem:[%s0 + $0x18] sm:$0xff]
    %v34 = vld [vmem:[%s0 + $0x20] sm:$0xff]
    %v35 = vld [vmem:[%s0 + $0x28] sm:$0xff]
    %v36 = vld [vmem:[%s0 + $0x30] sm:$0xff]
    %v37 = vld [vmem:[%s0 + $0x38] sm:$0xff]
    %v38 = vld [vmem:[%s1] sm:$0x1]
    %40 = vset.pattern.permute.xlu0 0
    %41 = vperm.xlu0 %40, %v30
    %v42 = vpop.permute.xlu0 %41
    %45 = vset.pattern.permute.xlu0 0
    %46 = vperm.xlu0 %45, %v31
    %v47 = vpop.permute.xlu0 %46
    %50 = vset.pattern.permute.xlu0 0
    %51 = vperm.xlu0 %50, %v32
    %v52 = vpop.permute.xlu0 %51
    %55 = vset.pattern.permute.xlu0 0
    %56 = vperm.xlu0 %55, %v33
    %v57 = vpop.permute.xlu0 %56
    %60 = vset.pattern.permute.xlu0 0
    %61 = vperm.xlu0 %60, %v34
    %v62 = vpop.permute.xlu0 %61
    %65 = vset.pattern.permute.xlu0 0
    %66 = vperm.xlu0 %65, %v35
    %v67 = vpop.permute.xlu0 %66
    %70 = vset.pattern.permute.xlu0 0
    %71 = vperm.xlu0 %70, %v36
    %v72 = vpop.permute.xlu0 %71
    %75 = vset.pattern.permute.xlu0 0
    %76 = vperm.xlu0 %75, %v37
    %v77 = vpop.permute.xlu0 %76
    %v79 = vlaneseq
    %v80 = vshrl.u32 %v79, 7
    %v81 = vsub.s32 0, %v80
    %v82 = vrot.slane %v38, %v81
    %v83 = vmul.f32 %v42, %v82
    %v84 = vmul.f32 %v47, %v82
    %v85 = vmul.f32 %v52, %v82
    %v86 = vmul.f32 %v57, %v82
    %v87 = vmul.f32 %v62, %v82
    %v88 = vmul.f32 %v67, %v82
    %v89 = vmul.f32 %v72, %v82
    %v90 = vmul.f32 %v77, %v82
    %v91 = vld [vmem:[%s1 + $0x1] sm:$0x1]
    %92 = vset.pattern.permute.xlu0 1
    %93 = vperm.xlu0 %92, %v30
    %v94 = vpop.permute.xlu0 %93
    %96 = vset.pattern.permute.xlu0 1
    %97 = vperm.xlu0 %96, %v31
    %v98 = vpop.permute.xlu0 %97
    %100 = vset.pattern.permute.xlu0 1
    %101 = vperm.xlu0 %100, %v32
    %v102 = vpop.permute.xlu0 %101
    %104 = vset.pattern.permute.xlu0 1
    %105 = vperm.xlu0 %104, %v33
    %v106 = vpop.permute.xlu0 %105
    %108 = vset.pattern.permute.xlu0 1
    %109 = vperm.xlu0 %108, %v34
    %v110 = vpop.permute.xlu0 %109
    %112 = vset.pattern.permute.xlu0 1
    %113 = vperm.xlu0 %112, %v35
    %v114 = vpop.permute.xlu0 %113
    %116 = vset.pattern.permute.xlu0 1
    %117 = vperm.xlu0 %116, %v36
    %v118 = vpop.permute.xlu0 %117
    %120 = vset.pattern.permute.xlu0 1
    %121 = vperm.xlu0 %120, %v37
    %v122 = vpop.permute.xlu0 %121
    %v124 = vlaneseq
    %v125 = vshrl.u32 %v124, 7
    %v126 = vsub.s32 0, %v125
    %v127 = vrot.slane %v91, %v126
    %v128 = vmul.f32 %v94, %v127
    %v129 = vmul.f32 %v98, %v127
    %v130 = vmul.f32 %v102, %v127
    %v131 = vmul.f32 %v106, %v127
    %v132 = vmul.f32 %v110, %v127
    %v133 = vmul.f32 %v114, %v127
    %v134 = vmul.f32 %v118, %v127
    %v135 = vmul.f32 %v122, %v127
    %v136 = vadd.f32 %v83, %v128
    %v137 = vadd.f32 %v84, %v129
    %v138 = vadd.f32 %v85, %v130
    %v139 = vadd.f32 %v86, %v131
    %v140 = vadd.f32 %v87, %v132
    %v141 = vadd.f32 %v88, %v133
    %v142 = vadd.f32 %v89, %v134
    %v143 = vadd.f32 %v90, %v135
    %v144 = vld [vmem:[%s1 + $0x2] sm:$0x1]
    %145 = vset.pattern.permute.xlu0 2
    %146 = vperm.xlu0 %145, %v30
    %v147 = vpop.permute.xlu0 %146
    %149 = vset.pattern.permute.xlu0 2
    %150 = vperm.xlu0 %149, %v31
    %v151 = vpop.permute.xlu0 %150
    %153 = vset.pattern.permute.xlu0 2
    %154 = vperm.xlu0 %153, %v32
    %v155 = vpop.permute.xlu0 %154
    %157 = vset.pattern.permute.xlu0 2
    %158 = vperm.xlu0 %157, %v33
    %v159 = vpop.permute.xlu0 %158
    %161 = vset.pattern.permute.xlu0 2
    %162 = vperm.xlu0 %161, %v34
    %v163 = vpop.permute.xlu0 %162
    %165 = vset.pattern.permute.xlu0 2
    %166 = vperm.xlu0 %165, %v35
    %v167 = vpop.permute.xlu0 %166
    %169 = vset.pattern.permute.xlu0 2
    %170 = vperm.xlu0 %169, %v36
    %v171 = vpop.permute.xlu0 %170
    %173 = vset.pattern.permute.xlu0 2
    %174 = vperm.xlu0 %173, %v37
    %v175 = vpop.permute.xlu0 %174
    %v177 = vlaneseq
    %v178 = vshrl.u32 %v177, 7
    %v179 = vsub.s32 0, %v178
    %v180 = vrot.slane %v144, %v179
    %v181 = vmul.f32 %v147, %v180
    %v182 = vmul.f32 %v151, %v180
    %v183 = vmul.f32 %v155, %v180
    %v184 = vmul.f32 %v159, %v180
    %v185 = vmul.f32 %v163, %v180
    %v186 = vmul.f32 %v167, %v180
    %v187 = vmul.f32 %v171, %v180
    %v188 = vmul.f32 %v175, %v180
    %v189 = vadd.f32 %v136, %v181
    %v190 = vadd.f32 %v137, %v182
    %v191 = vadd.f32 %v138, %v183
    %v192 = vadd.f32 %v139, %v184
    %v193 = vadd.f32 %v140, %v185
    %v194 = vadd.f32 %v141, %v186
    %v195 = vadd.f32 %v142, %v187
    %v196 = vadd.f32 %v143, %v188
    %v197 = vld [vmem:[%s1 + $0x3] sm:$0x1]
    %198 = vset.pattern.permute.xlu0 3
    %199 = vperm.xlu0 %198, %v30
    %v200 = vpop.permute.xlu0 %199
    %202 = vset.pattern.permute.xlu0 3
    %203 = vperm.xlu0 %202, %v31
    %v204 = vpop.permute.xlu0 %203
    %206 = vset.pattern.permute.xlu0 3
    %207 = vperm.xlu0 %206, %v32
    %v208 = vpop.permute.xlu0 %207
    %210 = vset.pattern.permute.xlu0 3
    %211 = vperm.xlu0 %210, %v33
    %v212 = vpop.permute.xlu0 %211
    %214 = vset.pattern.permute.xlu0 3
    %215 = vperm.xlu0 %214, %v34
    %v216 = vpop.permute.xlu0 %215
    %218 = vset.pattern.permute.xlu0 3
    %219 = vperm.xlu0 %218, %v35
    %v220 = vpop.permute.xlu0 %219
    %222 = vset.pattern.permute.xlu0 3
    %223 = vperm.xlu0 %222, %v36
    %v224 = vpop.permute.xlu0 %223
    %226 = vset.pattern.permute.xlu0 3
    %227 = vperm.xlu0 %226, %v37
    %v228 = vpop.permute.xlu0 %227
    %v230 = vlaneseq
    %v231 = vshrl.u32 %v230, 7
    %v232 = vsub.s32 0, %v231
    %v233 = vrot.slane %v197, %v232
    %v234 = vmul.f32 %v200, %v233
    %v235 = vmul.f32 %v204, %v233
    %v236 = vmul.f32 %v208, %v233
    %v237 = vmul.f32 %v212, %v233
    %v238 = vmul.f32 %v216, %v233
    %v239 = vmul.f32 %v220, %v233
    %v240 = vmul.f32 %v224, %v233
    %v241 = vmul.f32 %v228, %v233
    %v242 = vadd.f32 %v189, %v234
    %v243 = vadd.f32 %v190, %v235
    %v244 = vadd.f32 %v191, %v236
    %v245 = vadd.f32 %v192, %v237
    %v246 = vadd.f32 %v193, %v238
    %v247 = vadd.f32 %v194, %v239
    %v248 = vadd.f32 %v195, %v240
    %v249 = vadd.f32 %v196, %v241
    %v250 = vld [vmem:[%s2] sm:$0x1]
    %v252 = vlaneseq
    %v253 = vshrl.u32 %v252, 7
    %v254 = vsub.s32 0, %v253
    %v255 = vrot.slane %v250, %v254
    %v257 = vadd.f32 %v242, %v255
    %v258 = vadd.f32 %v243, %v255
    %v259 = vadd.f32 %v244, %v255
    %v260 = vadd.f32 %v245, %v255
    %v261 = vadd.f32 %v246, %v255
    %v262 = vadd.f32 %v247, %v255
    %v263 = vadd.f32 %v248, %v255
    %v264 = vadd.f32 %v249, %v255
    %vm265 = vcmask 261120
    %266 = vst.msk [vmem:[%s5] sm:$0xff] %vm265, %v257
    %267 = vst.msk [vmem:[%s5 + $0x8] sm:$0xff] %vm265, %v258
    %268 = vst.msk [vmem:[%s5 + $0x10] sm:$0xff] %vm265, %v259
    %269 = vst.msk [vmem:[%s5 + $0x18] sm:$0xff] %vm265, %v260
    %270 = vst.msk [vmem:[%s5 + $0x20] sm:$0xff] %vm265, %v261
    %271 = vst.msk [vmem:[%s5 + $0x28] sm:$0xff] %vm265, %v262
    %272 = vst.msk [vmem:[%s5 + $0x30] sm:$0xff] %vm265, %v263
    %273 = vst.msk [vmem:[%s5 + $0x38] sm:$0xff] %vm265, %v264
    %p274 = scmp.ne.s32.totalorder 0, 0
    // Predicated region
    $region26: #{tpu_custom_call.1} parent=1 // pred_check
      %p275 = pneg %p274
    $region27: #{tpu_custom_call.1} parent=1 // pred_check_branch
      %277 = sbr.rel (%p275) target = $region29
    $region28: #{tpu_custom_call.1} parent=1 // pred_region
      %v278 = vld [vmem:[#allocation2] sm:$0x1]
      %v279 = vsel %vm265, %v257, 0.0
      %v280 = vsel %vm265, %v258, 0.0
      %v281 = vadd.f32 %v279, %v280
      %v282 = vsel %vm265, %v259, 0.0
      %v283 = vadd.f32 %v281, %v282
      %v284 = vsel %vm265, %v260, 0.0
      %v285 = vadd.f32 %v283, %v284
      %v286 = vsel %vm265, %v261, 0.0
      %v287 = vadd.f32 %v285, %v286
      %v288 = vsel %vm265, %v262, 0.0
      %v289 = vadd.f32 %v287, %v288
      %v290 = vsel %vm265, %v263, 0.0
      %v291 = vadd.f32 %v289, %v290
      %v292 = vsel %vm265, %v264, 0.0
      %v293 = vadd.f32 %v291, %v292
      %v294 = vrot.slane %v293, 4
      %v295 = vadd.f32 %v293, %v294
      %v296 = vrot.slane %v295, 2
      %v297 = vadd.f32 %v295, %v296
      %v298 = vrot.slane %v297, 1
      %v299 = vadd.f32 %v297, %v298
      %v300 = vadd.f32 %v278, %v299
      %vm301 = vcmask 253952
      %302 = vst.msk [vmem:[#allocation2] sm:$0x1] %vm301, %v300
      %v303 = vld [vmem:[#allocation3] sm:$0x1]
      %v304 = vmul.f32 %v257, %v257
      %v305 = vmul.f32 %v258, %v258
      %v306 = vmul.f32 %v259, %v259
      %v307 = vmul.f32 %v260, %v260
      %v308 = vmul.f32 %v261, %v261
      %v309 = vmul.f32 %v262, %v262
      %v310 = vmul.f32 %v263, %v263
      %v311 = vmul.f32 %v264, %v264
      %v312 = vsel %vm265, %v304, 0.0
      %v313 = vsel %vm265, %v305, 0.0
      %v314 = vadd.f32 %v312, %v313
      %v315 = vsel %vm265, %v306, 0.0
      %v316 = vadd.f32 %v314, %v315
      %v317 = vsel %vm265, %v307, 0.0
      %v318 = vadd.f32 %v316, %v317
      %v319 = vsel %vm265, %v308, 0.0
      %v320 = vadd.f32 %v318, %v319
      %v321 = vsel %vm265, %v309, 0.0
      %v322 = vadd.f32 %v320, %v321
      %v323 = vsel %vm265, %v310, 0.0
      %v324 = vadd.f32 %v322, %v323
      %v325 = vsel %vm265, %v311, 0.0
      %v326 = vadd.f32 %v324, %v325
      %v327 = vrot.slane %v326, 4
      %v328 = vadd.f32 %v326, %v327
      %v329 = vrot.slane %v328, 2
      %v330 = vadd.f32 %v328, %v329
      %v331 = vrot.slane %v330, 1
      %v332 = vadd.f32 %v330, %v331
      %v333 = vadd.f32 %v303, %v332
      %334 = vst.msk [vmem:[#allocation3] sm:$0x1] %vm301, %v333
    $region29: #{tpu_custom_call.1} parent=1 // pred_fallthru
      _
    // Predicated region
    $region30: #{tpu_custom_call.1} parent=1 // pred_check
      %p335 = pneg %p23
    $region31: #{tpu_custom_call.1} parent=1 // pred_check_branch
      %337 = sbr.rel (%p335) target = $region33
    $region32: #{tpu_custom_call.1} parent=1 // pred_region
      %s338 = smul.u32 0, 64
      %v339 = vlaneseq
      %v340 = vshrl.u32 %v339, 7
      %v341 = vadd.s32 %v340, 8
      %v342 = vadd.s32 %v340, 16
      %v343 = vadd.s32 %v340, 24
      %v344 = vadd.s32 %v340, 32
      %v345 = vadd.s32 %v340, 40
      %v346 = vadd.s32 %v340, 48
      %v347 = vadd.s32 %v340, 56
      %v348 = vstv %s338
      %v349 = vadd.s32 %v348, %v340
      %v350 = vadd.s32 %v348, %v341
      %v351 = vadd.s32 %v348, %v342
      %v352 = vadd.s32 %v348, %v343
      %v353 = vadd.s32 %v348, %v344
      %v354 = vadd.s32 %v348, %v345
      %v355 = vadd.s32 %v348, %v346
      %v356 = vadd.s32 %v348, %v347
      %vm357 = vcmp.lt.s32.totalorder %v349, 64
      %vm358 = vcmp.lt.s32.totalorder %v350, 64
      %vm359 = vcmp.lt.s32.totalorder %v351, 64
      %vm360 = vcmp.lt.s32.totalorder %v352, 64
      %vm361 = vcmp.lt.s32.totalorder %v353, 64
      %vm362 = vcmp.lt.s32.totalorder %v354, 64
      %vm363 = vcmp.lt.s32.totalorder %v355, 64
      %vm364 = vcmp.lt.s32.totalorder %v356, 64
      %v365 = vsel %vm357, %v257, 0.0
      %v366 = vsel %vm358, %v258, 0.0
      %v367 = vsel %vm359, %v259, 0.0
      %v368 = vsel %vm360, %v260, 0.0
      %v369 = vsel %vm361, %v261, 0.0
      %v370 = vsel %vm362, %v262, 0.0
      %v371 = vsel %vm363, %v263, 0.0
      %v372 = vsel %vm364, %v264, 0.0
      %v373 = vld [vmem:[#allocation2] sm:$0x1]
      %v374 = vsel %vm265, %v365, 0.0
      %v375 = vsel %vm265, %v366, 0.0
      %v376 = vadd.f32 %v374, %v375
      %v377 = vsel %vm265, %v367, 0.0
      %v378 = vadd.f32 %v376, %v377
      %v379 = vsel %vm265, %v368, 0.0
      %v380 = vadd.f32 %v378, %v379
      %v381 = vsel %vm265, %v369, 0.0
      %v382 = vadd.f32 %v380, %v381
      %v383 = vsel %vm265, %v370, 0.0
      %v384 = vadd.f32 %v382, %v383
      %v385 = vsel %vm265, %v371, 0.0
      %v386 = vadd.f32 %v384, %v385
      %v387 = vsel %vm265, %v372, 0.0
      %v388 = vadd.f32 %v386, %v387
      %v389 = vrot.slane %v388, 4
      %v390 = vadd.f32 %v388, %v389
      %v391 = vrot.slane %v390, 2
      %v392 = vadd.f32 %v390, %v391
      %v393 = vrot.slane %v392, 1
      %v394 = vadd.f32 %v392, %v393
      %v395 = vadd.f32 %v373, %v394
      %v396 = vld [vmem:[#allocation3] sm:$0x1]
      %v397 = vmul.f32 %v365, %v365
      %v398 = vmul.f32 %v366, %v366
      %v399 = vmul.f32 %v367, %v367
      %v400 = vmul.f32 %v368, %v368
      %v401 = vmul.f32 %v369, %v369
      %v402 = vmul.f32 %v370, %v370
      %v403 = vmul.f32 %v371, %v371
      %v404 = vmul.f32 %v372, %v372
      %v405 = vsel %vm265, %v397, 0.0
      %v406 = vsel %vm265, %v398, 0.0
      %v407 = vadd.f32 %v405, %v406
      %v408 = vsel %vm265, %v399, 0.0
      %v409 = vadd.f32 %v407, %v408
      %v410 = vsel %vm265, %v400, 0.0
      %v411 = vadd.f32 %v409, %v410
      %v412 = vsel %vm265, %v401, 0.0
      %v413 = vadd.f32 %v411, %v412
      %v414 = vsel %vm265, %v402, 0.0
      %v415 = vadd.f32 %v413, %v414
      %v416 = vsel %vm265, %v403, 0.0
      %v417 = vadd.f32 %v415, %v416
      %v418 = vsel %vm265, %v404, 0.0
      %v419 = vadd.f32 %v417, %v418
      %v420 = vrot.slane %v419, 4
      %v421 = vadd.f32 %v419, %v420
      %v422 = vrot.slane %v421, 2
      %v423 = vadd.f32 %v421, %v422
      %v424 = vrot.slane %v423, 1
      %v425 = vadd.f32 %v423, %v424
      %v426 = vadd.f32 %v396, %v425
      %v427 = vmul.f32 %v395, 0.015625
      %v428 = vmul.f32 %v426, 0.015625
      %v429 = vmul.f32 %v427, %v427
      %v430 = vsub.f32 %v428, %v429
      %v431 = vmax.f32 %v430, 0.0
      %v432 = vld [vmem:[%s3] sm:$0x1]
      %v433 = vadd.f32 %v431, 1e-05
      %v434 = vrsqrt.pop %v433
      %v435 = vmul.f32 %v432, %v434
      %v436 = vld [vmem:[%s4] sm:$0x1]
      %v437 = vmul.f32 %v427, %v435
      %v438 = vsub.f32 %v436, %v437
      %vm439 = vcmask 253952
      %440 = vst.msk [vmem:[#allocation4] sm:$0x1] %vm439, %v435
      %441 = vst.msk [vmem:[#allocation4 + $0x1] sm:$0x1] %vm439, %v438
    $region33: #{tpu_custom_call.1} parent=1 // pred_fallthru
      _
    // Predicated region
    $region34: #{tpu_custom_call.1} parent=1 // pred_check
      _
    $region35: #{tpu_custom_call.1} parent=1 // pred_check_branch
      %443 = sbr.rel (0) target = $region37
    $region36: #{tpu_custom_call.1} parent=1 // pred_region
      _
    $region37: #{tpu_custom_call.1} parent=1 // pred_fallthru
      _
    // Predicated region
    $region38: #{tpu_custom_call.1} parent=1 // pred_check
      _
    $region39: #{tpu_custom_call.1} parent=1 // pred_check_branch
      %445 = sbr.rel (0) target = $region41
    $region40: #{tpu_custom_call.1} parent=1 // pred_region
      %s447 = ssub.s32 32, 32
      %448 = vsyncadd [#allocation5], %s447
      %s450 = sshll.u32 [#allocation4], 4
      %s451 = int_to_ptr.vmem [resolvable:$true] %s450
      %453 = dma.vmem_to_hbm [thread:$0]  %s451, 32, %s6, [#allocation5]
    $region41: #{tpu_custom_call.1} parent=1 // pred_fallthru
      _
    // Predicated region
    $region42: #{tpu_custom_call.1} parent=1 // pred_check
      _
    $region43: #{tpu_custom_call.1} parent=1 // pred_check_branch
      %455 = sbr.rel (0) target = $region45
    $region44: #{tpu_custom_call.1} parent=1 // pred_region
      _
    $region45: #{tpu_custom_call.1} parent=1 // pred_fallthru
      _
    // Predicated region
    $region46: #{tpu_custom_call.1} parent=1 // pred_check
      _
    $region47: #{tpu_custom_call.1} parent=1 // pred_check_branch
      %457 = sbr.rel (0) target = $region49
    $region48: #{tpu_custom_call.1} parent=1 // pred_region
      %458 = dma.done [#allocation5], 32
    $region49: #{tpu_custom_call.1} parent=1 // pred_fallthru
      _
    %459 = vsyncpa [#allocation5], 1

</llo_original>
